<compile_context>
chip_gen: v5e
topology: v5e:2x2
jax: 0.10.0
libtpu: 0.0.40
codegen_flags: <defaults>
</compile_context>

<pallas_src>
import functools

import jax
import jax.numpy as jnp
from jax.experimental import pallas as pl
from jax.experimental.pallas import tpu as pltpu


def _round_up(v: int, m: int) -> int:
    return ((v + m - 1) // m) * m


# --------------------------------------------------------------------------
# Shared finalize: bias, tree-gate select, gated multiply, lane-dense store.
#   acc     : [tn, D_tot] f32   (D_tot = D_out_p + 128; branch logits at
#                                columns D_out_p .. D_out_p+2)
# --------------------------------------------------------------------------
def _finalize(acc, b_ref, gl_ref, o_ref, d_out_p):
    acc = acc + b_ref[...]                       # bias added once
    lin = acc[:, :d_out_p]                       # [tn, D_out_p] linear output
    logits = acc[:, d_out_p:]                    # [tn, 128]; lanes 0..2 are logits

    d_root = logits[:, 0:1] > 0.0                # [tn, 1]
    d_left = logits[:, 1:2] > 0.0
    d_right = logits[:, 2:3] > 0.0

    gl = gl_ref[...]                             # [4, D_out_p] = tanh(leaves) + 1
    gate = jnp.where(d_root,
                     jnp.where(d_right, gl[3:4, :], gl[2:3, :]),
                     jnp.where(d_left, gl[1:2, :], gl[0:1, :]))

    o_ref[...] = (gate * lin).astype(o_ref.dtype)


# --------------------------------------------------------------------------
# Kernel variant A: whole reduction fits one block (grid = (batch,)).
# --------------------------------------------------------------------------
def _cascade_gated_kernel_single(x_ref, w_ref, b_ref, gl_ref, o_ref, *, d_out_p):
    acc = jnp.dot(x_ref[...], w_ref[...], preferred_element_type=jnp.float32)
    _finalize(acc, b_ref, gl_ref, o_ref, d_out_p)


# --------------------------------------------------------------------------
# Kernel variant B: K-tiled reduction (grid = (batch, K)), f32 VMEM accumulator.
# --------------------------------------------------------------------------
def _cascade_gated_kernel_multi(x_ref, w_ref, b_ref, gl_ref, o_ref, acc_ref, *,
                                d_out_p):
    k = pl.program_id(1)

    @pl.when(k == 0)
    def _init():
        acc_ref[...] = jnp.zeros_like(acc_ref)

    acc_ref[...] += jnp.dot(x_ref[...], w_ref[...],
                            preferred_element_type=jnp.float32)

    @pl.when(k == pl.num_programs(1) - 1)
    def _done():
        _finalize(acc_ref[...], b_ref, gl_ref, o_ref, d_out_p)


# --------------------------------------------------------------------------
# One layer on already-padded activations.
#   x_p : [N_p, D_in_p] f32 (padding lanes / rows are zero)
# Returns (out_p [N_p, D_out_p] f32, d_out, d_out_p).  Padding lanes of out_p
# are exactly zero (gated leaves are zero there), so it can chain directly.
# --------------------------------------------------------------------------
def _cascade_layer_padded(x_p, params, *, d_in, tn, tile_k, compute_dtype):
    w_branch, b_branch, leaves, w_lin, b_lin = params
    N_p, d_in_p = x_p.shape
    d_out = w_lin.shape[1]

    d_out_p = _round_up(d_out, 128)      # lane-dense linear-output columns
    BR_PAD = 128                         # lane-padded slot for the 3 branch logits
    d_tot = d_out_p + BR_PAD

    # ---- K (D_in_p) tile: largest multiple of 128 dividing d_in_p, <= tile_k
    if d_in_p <= tile_k:
        tk = d_in_p
    else:
        tk = 128
        cand = (tile_k // 128) * 128
        while cand >= 128:
            if d_in_p % cand == 0:
                tk = cand
                break
            cand -= 128
    num_k = d_in_p // tk

    # ---- fused weight / bias, precomputed gated leaves ----------------------
    w_all = jnp.zeros((d_in_p, d_tot), jnp.float32)
    w_all = w_all.at[:d_in, :d_out].set(w_lin.astype(jnp.float32))
    w_all = w_all.at[:d_in, d_out_p:d_out_p + 3].set(w_branch.astype(jnp.float32))

    b_all = jnp.zeros((1, d_tot), jnp.float32)
    b_all = b_all.at[:, :d_out].set(jnp.reshape(b_lin, (1, d_out)).astype(jnp.float32))
    b_all = b_all.at[:, d_out_p:d_out_p + 3].set(
        jnp.reshape(b_branch, (1, 3)).astype(jnp.float32))

    gated_leaves = jnp.zeros((4, d_out_p), jnp.float32)
    gated_leaves = gated_leaves.at[:, :d_out].set(
        jnp.tanh(leaves.astype(jnp.float32)) + 1.0)

    # Optional bf16 compute path (MXU accumulates in f32 either way).
    xc = x_p.astype(compute_dtype)
    wc = w_all.astype(compute_dtype)

    if num_k == 1:
        kernel = functools.partial(_cascade_gated_kernel_single, d_out_p=d_out_p)
        grid = (N_p // tn,)
        in_specs = [
            pl.BlockSpec((tn, tk), lambda i: (i, 0)),          # x tile
            pl.BlockSpec((tk, d_tot), lambda i: (0, 0)),       # fused weight
            pl.BlockSpec((1, d_tot), lambda i: (0, 0)),        # fused bias row
            pl.BlockSpec((4, d_out_p), lambda i: (0, 0)),      # gated leaves
        ]
        out_specs = pl.BlockSpec((tn, d_out_p), lambda i: (i, 0))
        scratch_shapes = []
        dims = ("parallel",)
    else:
        kernel = functools.partial(_cascade_gated_kernel_multi, d_out_p=d_out_p)
        grid = (N_p // tn, num_k)
        in_specs = [
            pl.BlockSpec((tn, tk), lambda i, k: (i, k)),       # x tile
            pl.BlockSpec((tk, d_tot), lambda i, k: (k, 0)),    # fused weight tile
            pl.BlockSpec((1, d_tot), lambda i, k: (0, 0)),     # fused bias row
            pl.BlockSpec((4, d_out_p), lambda i, k: (0, 0)),   # gated leaves
        ]
        out_specs = pl.BlockSpec((tn, d_out_p), lambda i, k: (i, 0))
        scratch_shapes = [pltpu.VMEM((tn, d_tot), jnp.float32)]
        dims = ("parallel", "arbitrary")

    out_p = pl.pallas_call(
        kernel,
        out_shape=jax.ShapeDtypeStruct((N_p, d_out_p), jnp.float32),
        grid_spec=pltpu.PrefetchScalarGridSpec(
            num_scalar_prefetch=0,
            grid=grid,
            in_specs=in_specs,
            out_specs=out_specs,
            scratch_shapes=scratch_shapes,
        ),
        compiler_params=pltpu.CompilerParams(
            dimension_semantics=dims,
            vmem_limit_bytes=64 * 1024 * 1024,
        ),
    )(xc, wc, b_all, gated_leaves)

    return out_p, d_out, d_out_p


# --------------------------------------------------------------------------
# CascadeSequential.forward: pad once, chain layers on padded activations,
# slice once at the end.
# --------------------------------------------------------------------------
def cascade_sequential(x, layer_params, *, tile_n=256, tile_k=512,
                       compute_dtype=jnp.float32):
    """x: [N, D_in] f32; returns [N, D_out_last] f32."""
    N, d_in = x.shape

    # batch tiling (padded, no divisibility requirement on N)
    tn = min(tile_n, _round_up(N, 8))
    N_p = _round_up(N, tn)

    d_in_p = _round_up(d_in, 128)
    x_p = jnp.zeros((N_p, d_in_p), jnp.float32).at[:N, :d_in].set(
        x.astype(jnp.float32))

    out_p = x_p
    d_out = d_in
    for params in layer_params:
        out_p, d_out, _ = _cascade_layer_padded(
            out_p, params, d_in=d_out, tn=tn, tile_k=tile_k,
            compute_dtype=compute_dtype)

    return out_p[:N, :d_out]


def cascade_linear_gated_tao(x, w_branch, b_branch, leaves, w_lin, b_lin, **kw):
    """Single-layer convenience wrapper."""
    return cascade_sequential(x, [(w_branch, b_branch, leaves, w_lin, b_lin)], **kw)


# --------------------------------------------------------------------------
# Pure-JAX reference
# --------------------------------------------------------------------------
def _reference_layer(x, w_branch, b_branch, leaves, w_lin, b_lin,
                     compute_dtype=jnp.float32):
    xc = x.astype(compute_dtype).astype(jnp.float32)
    wbc = w_branch.astype(compute_dtype).astype(jnp.float32)
    wlc = w_lin.astype(compute_dtype).astype(jnp.float32)

    logits = xc @ wbc + jnp.reshape(b_branch, (1, -1))
    d_root = logits[:, 0:1] > 0
    d_left = logits[:, 1:2] > 0
    d_right = logits[:, 2:3] > 0
    leaf_r = jnp.where(d_right, leaves[3], leaves[2])
    leaf_l = jnp.where(d_left, leaves[1], leaves[0])
    tree_out = jnp.where(d_root, leaf_r, leaf_l)
    gates = jnp.tanh(tree_out) + 1.0
    lin = xc @ wlc + jnp.reshape(b_lin, (1, -1))
    return gates * lin


def _reference(x, layer_params, compute_dtype=jnp.float32):
    out = x
    for params in layer_params:
        out = _reference_layer(out, *params, compute_dtype=compute_dtype)
    return out


# --------------------------------------------------------------------------
def _make_layer_params(key, d_in, d_out):
    k_wb, k_bb, k_leaf, k_w, k_b = jax.random.split(key, 5)
    w_branch = jax.random.normal(k_wb, (d_in, 3), dtype=jnp.float32) * 0.5
    b_branch = jax.random.normal(k_bb, (1, 3), dtype=jnp.float32) * 0.1
    leaves = jax.random.normal(k_leaf, (4, d_out), dtype=jnp.float32)
    # nn.Linear stores weight as [out, in]; kernel consumes [in, out].
    w_lin = (jax.random.normal(k_w, (d_out, d_in), dtype=jnp.float32)
             * (1.0 / (d_in ** 0.5))).T
    b_lin = jax.random.normal(k_b, (1, d_out), dtype=jnp.float32) * 0.1
    return (w_branch, b_branch, leaves, w_lin, b_lin)


if __name__ == "__main__":
    key = jax.random.PRNGKey(0)
    k_x, k_l1, k_l2 = jax.random.split(key, 3)

    # ---- test 1: small chain, single-K fast path -----------------------------
    N = 16
    dims = [(32, 48), (48, 32)]          # CascadeSequential of two gated layers

    x = jax.random.normal(k_x, (N, dims[0][0]), dtype=jnp.float32)
    layer_params = [
        _make_layer_params(k_l1, *dims[0]),
        _make_layer_params(k_l2, *dims[1]),
    ]

    # f32 path: exact match against the reference
    out = jax.block_until_ready(
        cascade_sequential(x, layer_params, compute_dtype=jnp.float32))
    ref = _reference(x, layer_params, compute_dtype=jnp.float32)
    assert out.shape == (N, dims[-1][1])
    assert jnp.allclose(out, ref, atol=1e-5, rtol=1e-5)

    # bf16 compute path (f32 MXU accumulation), looser tolerance
    out_bf16 = jax.block_until_ready(
        cascade_sequential(x, layer_params, compute_dtype=jnp.bfloat16))
    ref_bf16 = _reference(x, layer_params, compute_dtype=jnp.bfloat16)
    assert jnp.allclose(out_bf16, ref_bf16, atol=5e-3, rtol=5e-3)

    # ---- test 2: ragged batch + K-tiled accumulation path (f32) -------------
    key2 = jax.random.PRNGKey(1)
    k_x2, k_l3, k_l4 = jax.random.split(key2, 3)
    N2 = 24
    dims2 = [(256, 40), (40, 64)]
    x2 = jax.random.normal(k_x2, (N2, dims2[0][0]), dtype=jnp.float32)
    layer_params2 = [
        _make_layer_params(k_l3, *dims2[0]),
        _make_layer_params(k_l4, *dims2[1]),
    ]
    out2 = jax.block_until_ready(
        cascade_sequential(x2, layer_params2, tile_k=128))
    ref2 = _reference(x2, layer_params2)
    assert out2.shape == (N2, dims2[-1][1])
    assert jnp.allclose(out2, ref2, atol=1e-4, rtol=1e-4)

    # TODO(synk): update_local / TAO tree-fitting is a training-time optimizer
    # (no forward-pass compute) and is intentionally not ported.
    print("KERNEL_OK")
</pallas_src>

<mosaic_0001>
module attributes {stable_mosaic.version = 11 : i64} {
  func.func @_cascade_gated_kernel_single(%arg0: i32, %arg1: memref<16x128xf32, #tpu.memory_space<vmem>>, %arg2: memref<128x256xf32, #tpu.memory_space<vmem>>, %arg3: memref<1x256xf32, #tpu.memory_space<vmem>>, %arg4: memref<4x128xf32, #tpu.memory_space<vmem>>, %arg5: memref<16x128xf32, #tpu.memory_space<vmem>>) attributes {dimension_semantics = [#tpu.dimension_semantics<parallel>], iteration_bounds = array<i64: 1>, scalar_prefetch = 0 : i64, scratch_operands = 0 : i64, tpu.core_type = #tpu.core_type<tc>, window_params = [{transform_indices = @transform_0, window_bounds = array<i64: 16, 128>}, {pipeline_mode = #tpu.pipeline_mode<synchronous>, transform_indices = @transform_1, window_bounds = array<i64: 128, 256>}, {pipeline_mode = #tpu.pipeline_mode<synchronous>, transform_indices = @transform_2, window_bounds = array<i64: 1, 256>}, {pipeline_mode = #tpu.pipeline_mode<synchronous>, transform_indices = @transform_3, window_bounds = array<i64: 4, 128>}, {transform_indices = @transform_4, window_bounds = array<i64: 16, 128>}]} {
    %c0 = arith.constant 0 : index
    %c0_0 = arith.constant 0 : index
    %0 = vector.load %arg1[%c0, %c0_0] : memref<16x128xf32, #tpu.memory_space<vmem>>, vector<16x128xf32>
    %c0_1 = arith.constant 0 : index
    %c0_2 = arith.constant 0 : index
    %1 = vector.load %arg2[%c0_1, %c0_2] : memref<128x256xf32, #tpu.memory_space<vmem>>, vector<128x256xf32>
    %cst = arith.constant dense<0.000000e+00> : vector<16x256xf32>
    %2 = tpu.matmul %0, %1, %cst {dimension_numbers = #tpu.dot_dimension_numbers<[1], [0], [0], [1], [0, 0, 1, 1], [], []>} : vector<16x128xf32>, vector<128x256xf32>, vector<16x256xf32> -> vector<16x256xf32>
    %c0_3 = arith.constant 0 : index
    %c0_4 = arith.constant 0 : index
    %3 = vector.load %arg3[%c0_3, %c0_4] : memref<1x256xf32, #tpu.memory_space<vmem>>, vector<1x256xf32>
    %4 = vector.broadcast %3 : vector<1x256xf32> to vector<16x256xf32>
    %5 = arith.addf %2, %4 : vector<16x256xf32>
    %6 = vector.extract_strided_slice %5 {offsets = [0, 0], sizes = [16, 128], strides = [1, 1]} : vector<16x256xf32> to vector<16x128xf32>
    %7 = vector.extract_strided_slice %5 {offsets = [0, 128], sizes = [16, 128], strides = [1, 1]} : vector<16x256xf32> to vector<16x128xf32>
    %8 = vector.extract_strided_slice %7 {offsets = [0, 0], sizes = [16, 1], strides = [1, 1]} : vector<16x128xf32> to vector<16x1xf32>
    %cst_5 = arith.constant 0.000000e+00 : f32
    %9 = vector.broadcast %cst_5 : f32 to vector<16x1xf32>
    %10 = arith.cmpf ogt, %8, %9 : vector<16x1xf32>
    %11 = vector.extract_strided_slice %7 {offsets = [0, 1], sizes = [16, 1], strides = [1, 1]} : vector<16x128xf32> to vector<16x1xf32>
    %cst_6 = arith.constant 0.000000e+00 : f32
    %12 = vector.broadcast %cst_6 : f32 to vector<16x1xf32>
    %13 = arith.cmpf ogt, %11, %12 : vector<16x1xf32>
    %14 = vector.extract_strided_slice %7 {offsets = [0, 2], sizes = [16, 1], strides = [1, 1]} : vector<16x128xf32> to vector<16x1xf32>
    %cst_7 = arith.constant 0.000000e+00 : f32
    %15 = vector.broadcast %cst_7 : f32 to vector<16x1xf32>
    %16 = arith.cmpf ogt, %14, %15 : vector<16x1xf32>
    %c0_8 = arith.constant 0 : index
    %c0_9 = arith.constant 0 : index
    %17 = vector.load %arg4[%c0_8, %c0_9] : memref<4x128xf32, #tpu.memory_space<vmem>>, vector<4x128xf32>
    %18 = vector.extract_strided_slice %17 {offsets = [3, 0], sizes = [1, 128], strides = [1, 1]} : vector<4x128xf32> to vector<1x128xf32>
    %19 = vector.extract_strided_slice %17 {offsets = [2, 0], sizes = [1, 128], strides = [1, 1]} : vector<4x128xf32> to vector<1x128xf32>
    %20 = vector.shape_cast %16 : vector<16x1xi1> to vector<16x1xi1>
    %21 = vector.broadcast %20 : vector<16x1xi1> to vector<16x128xi1>
    %22 = vector.shape_cast %18 : vector<1x128xf32> to vector<1x128xf32>
    %23 = vector.broadcast %22 : vector<1x128xf32> to vector<16x128xf32>
    %24 = vector.shape_cast %19 : vector<1x128xf32> to vector<1x128xf32>
    %25 = vector.broadcast %24 : vector<1x128xf32> to vector<16x128xf32>
    %26 = arith.select %21, %23, %25 : vector<16x128xi1>, vector<16x128xf32>
    %27 = vector.extract_strided_slice %17 {offsets = [1, 0], sizes = [1, 128], strides = [1, 1]} : vector<4x128xf32> to vector<1x128xf32>
    %28 = vector.extract_strided_slice %17 {offsets = [0, 0], sizes = [1, 128], strides = [1, 1]} : vector<4x128xf32> to vector<1x128xf32>
    %29 = vector.shape_cast %13 : vector<16x1xi1> to vector<16x1xi1>
    %30 = vector.broadcast %29 : vector<16x1xi1> to vector<16x128xi1>
    %31 = vector.shape_cast %27 : vector<1x128xf32> to vector<1x128xf32>
    %32 = vector.broadcast %31 : vector<1x128xf32> to vector<16x128xf32>
    %33 = vector.shape_cast %28 : vector<1x128xf32> to vector<1x128xf32>
    %34 = vector.broadcast %33 : vector<1x128xf32> to vector<16x128xf32>
    %35 = arith.select %30, %32, %34 : vector<16x128xi1>, vector<16x128xf32>
    %36 = vector.shape_cast %10 : vector<16x1xi1> to vector<16x1xi1>
    %37 = vector.broadcast %36 : vector<16x1xi1> to vector<16x128xi1>
    %38 = arith.select %37, %26, %35 : vector<16x128xi1>, vector<16x128xf32>
    %39 = arith.mulf %38, %6 : vector<16x128xf32>
    %c0_10 = arith.constant 0 : index
    %c0_11 = arith.constant 0 : index
    %40 = vector.load %arg5[%c0_10, %c0_11] : memref<16x128xf32, #tpu.memory_space<vmem>>, vector<16x128xf32>
    tpu.vector_store %arg5[%c0_10, %c0_11], %39 {strides = array<i32>} : memref<16x128xf32, #tpu.memory_space<vmem>>, vector<16x128xf32>,
    return
  }
  func.func @transform_0(%arg0: i32) -> (i32, i32) {
    %c0_i32 = arith.constant 0 : i32
    %c0_i32_0 = arith.constant 0 : i32
    return %arg0, %c0_i32 : i32, i32
  }
  func.func @transform_1(%arg0: i32) -> (i32, i32) {
    %c0_i32 = arith.constant 0 : i32
    %c0_i32_0 = arith.constant 0 : i32
    %c0_i32_1 = arith.constant 0 : i32
    return %c0_i32, %c0_i32_0 : i32, i32
  }
  func.func @transform_2(%arg0: i32) -> (i32, i32) {
    %c0_i32 = arith.constant 0 : i32
    %c0_i32_0 = arith.constant 0 : i32
    %c0_i32_1 = arith.constant 0 : i32
    return %c0_i32, %c0_i32_0 : i32, i32
  }
  func.func @transform_3(%arg0: i32) -> (i32, i32) {
    %c0_i32 = arith.constant 0 : i32
    %c0_i32_0 = arith.constant 0 : i32
    %c0_i32_1 = arith.constant 0 : i32
    return %c0_i32, %c0_i32_0 : i32, i32
  }
  func.func @transform_4(%arg0: i32) -> (i32, i32) {
    %c0_i32 = arith.constant 0 : i32
    %c0_i32_0 = arith.constant 0 : i32
    return %arg0, %c0_i32 : i32, i32
  }
}

</mosaic_0001>

<llo_original>
// kernel: tpu_custom_call.1
$region0: #{tpu_custom_call.1}
  #allocation0 [shape = 'u32[]', space=smem, size = 0x4, offset = 0x4, fixed_abs, tag = 'smem constant byte address 0x4 - core index']
  #allocation1 [shape = 'u32[72,128]{1,0:T(1,128)}', space=vmem, size = 0x9000, scoped, tag = 'internal scratch']
  %s0 = inlined_call_operand.hbm [shape: f32[16,128], index: 0, kind: input, shape index: {}]
  %s1 = inlined_call_operand.hbm [shape: f32[128,256], index: 1, kind: input, shape index: {}]
  %s2 = inlined_call_operand.hbm [shape: f32[1,256], index: 2, kind: input, shape index: {}]
  %s3 = inlined_call_operand.hbm [shape: f32[4,128], index: 3, kind: input, shape index: {}]
  %s4 = inlined_call_operand.hbm [shape: f32[16,128], index: 4, kind: output, shape index: {}]
  %s5 = sld [smem:[#allocation0]]
  $region42: #{tpu_custom_call.1} parent=0
    _
  %s7 = ssub.s32 1, %s5
  %s8 = scalar_select 0, %s7, %s5
  $region1: #{tpu_custom_call.1} parent=0
    #allocation2 [shape = 'u8[8192]{0}', space=vmem, size = 0x2000, scoped, tag = 'input window, operand 0, single buffered']
    #allocation3 [shape = 's32[1]{0}', space=sflag, size = 0x4, scoped, tag = 'scoped memory for tpu_custom_call.1']
    #allocation4 [shape = 's32[1]{0}', space=sflag, size = 0x4, scoped, tag = 'scoped memory for tpu_custom_call.1']
    #allocation5 [shape = 'u8[131072]{0}', space=vmem, size = 0x20000, scoped, tag = 'input window, operand 1, single buffered']
    #allocation6 [shape = 's32[1]{0}', space=sflag, size = 0x4, scoped, tag = 'scoped memory for tpu_custom_call.1']
    #allocation7 [shape = 'u8[1024]{0}', space=vmem, size = 0x400, scoped, tag = 'input window, operand 2, single buffered']
    #allocation8 [shape = 'u8[2048]{0}', space=vmem, size = 0x800, scoped, tag = 'input window, operand 3, single buffered']
    #allocation9 [shape = 's32[1]{0}', space=sflag, size = 0x4, scoped, tag = 'scoped memory for tpu_custom_call.1']
    #allocation10 [shape = 'u8[8192]{0}', space=vmem, size = 0x2000, scoped, tag = 'output window, operand 0, single buffered']
    %9 = vsyncpa [#allocation3], 0
    %10 = vsyncpa [#allocation6], 0
    %11 = vsyncpa [#allocation9], 0
    %12 = vsyncpa [#allocation4], 0
    // Predicated region
    $region2: #{tpu_custom_call.1} parent=1 // pred_check
      _
    $region3: #{tpu_custom_call.1} parent=1 // pred_check_branch
      %14 = sbr.rel (0) target = $region5
    $region4: #{tpu_custom_call.1} parent=1 // pred_region
      %16 = vsyncadd [#allocation3], 0
      %s17 = sshll.u32 %s0, 4
      %s18 = int_to_ptr.hbm [resolvable:$true] %s17
      %s19 = sshll.u32 [#allocation2], 4
      %s20 = int_to_ptr.vmem [resolvable:$true] %s19
      %25 = dma.hbm_to_vmem [thread:$0]  %s18, 256, %s20, [#allocation3], 128, 128, 8
    $region5: #{tpu_custom_call.1} parent=1 // pred_fallthru
      _
    // Predicated region
    $region6: #{tpu_custom_call.1} parent=1 // pred_check
      _
    $region7: #{tpu_custom_call.1} parent=1 // pred_check_branch
      %27 = sbr.rel (0) target = $region9
    $region8: #{tpu_custom_call.1} parent=1 // pred_region
      %29 = vsyncadd [#allocation6], 0
      %s30 = sshll.u32 %s1, 4
      %s31 = int_to_ptr.hbm [resolvable:$true] %s30
      %s32 = sshll.u32 [#allocation5], 4
      %s33 = int_to_ptr.vmem [resolvable:$true] %s32
      %38 = dma.hbm_to_vmem [thread:$0]  %s31, 4096, %s33, [#allocation6], 256, 256, 16
    $region9: #{tpu_custom_call.1} parent=1 // pred_fallthru
      _
    // Predicated region
    $region10: #{tpu_custom_call.1} parent=1 // pred_check
      _
    $region11: #{tpu_custom_call.1} parent=1 // pred_check_branch
      %40 = sbr.rel (0) target = $region13
    $region12: #{tpu_custom_call.1} parent=1 // pred_region
      %42 = vsyncadd [#allocation6], 0
      %s44 = sshll.u32 %s2, 4
      %s45 = int_to_ptr.hbm [resolvable:$true] %s44
      %s46 = sshll.u32 [#allocation7], 4
      %s47 = int_to_ptr.vmem [resolvable:$true] %s46
      %49 = dma.hbm_to_vmem [thread:$0]  %s45, 32, %s47, [#allocation6]
    $region13: #{tpu_custom_call.1} parent=1 // pred_fallthru
      _
    // Predicated region
    $region14: #{tpu_custom_call.1} parent=1 // pred_check
      _
    $region15: #{tpu_custom_call.1} parent=1 // pred_check_branch
      %51 = sbr.rel (0) target = $region17
    $region16: #{tpu_custom_call.1} parent=1 // pred_region
      %53 = vsyncadd [#allocation9], 0
      %s55 = sshll.u32 %s3, 4
      %s56 = int_to_ptr.hbm [resolvable:$true] %s55
      %s57 = sshll.u32 [#allocation8], 4
      %s58 = int_to_ptr.vmem [resolvable:$true] %s57
      %60 = dma.hbm_to_vmem [thread:$0]  %s56, 64, %s58, [#allocation9]
    $region17: #{tpu_custom_call.1} parent=1 // pred_fallthru
      _
    // Predicated region
    $region18: #{tpu_custom_call.1} parent=1 // pred_check
      _
    $region19: #{tpu_custom_call.1} parent=1 // pred_check_branch
      %62 = sbr.rel (0) target = $region21
    $region20: #{tpu_custom_call.1} parent=1 // pred_region
      %64 = dma.done [#allocation3], 256
    $region21: #{tpu_custom_call.1} parent=1 // pred_fallthru
      _
    // Predicated region
    $region22: #{tpu_custom_call.1} parent=1 // pred_check
      _
    $region23: #{tpu_custom_call.1} parent=1 // pred_check_branch
      %66 = sbr.rel (0) target = $region25
    $region24: #{tpu_custom_call.1} parent=1 // pred_region
      %68 = dma.done [#allocation6], 4096
    $region25: #{tpu_custom_call.1} parent=1 // pred_fallthru
      _
    // Predicated region
    $region26: #{tpu_custom_call.1} parent=1 // pred_check
      _
    $region27: #{tpu_custom_call.1} parent=1 // pred_check_branch
      %70 = sbr.rel (0) target = $region29
    $region28: #{tpu_custom_call.1} parent=1 // pred_region
      %72 = dma.done [#allocation6], 32
    $region29: #{tpu_custom_call.1} parent=1 // pred_fallthru
      _
    // Predicated region
    $region30: #{tpu_custom_call.1} parent=1 // pred_check
      _
    $region31: #{tpu_custom_call.1} parent=1 // pred_check_branch
      %74 = sbr.rel (0) target = $region33
    $region32: #{tpu_custom_call.1} parent=1 // pred_region
      %76 = dma.done [#allocation9], 64
    $region33: #{tpu_custom_call.1} parent=1 // pred_fallthru
      _
    %v77 = vld [vmem:[#allocation2] sm:$0xff]
    %v78 = vld [vmem:[#allocation2 + $0x8] sm:$0xff]
    %v79 = vld [vmem:[#allocation5] sm:$0xff]
    %v80 = vld [vmem:[#allocation5 + $0x8] sm:$0xff]
    %v81 = vld [vmem:[#allocation5 + $0x10] sm:$0xff]
    %v82 = vld [vmem:[#allocation5 + $0x18] sm:$0xff]
    %v83 = vld [vmem:[#allocation5 + $0x20] sm:$0xff]
    %v84 = vld [vmem:[#allocation5 + $0x28] sm:$0xff]
    %v85 = vld [vmem:[#allocation5 + $0x30] sm:$0xff]
    %v86 = vld [vmem:[#allocation5 + $0x38] sm:$0xff]
    %v87 = vld [vmem:[#allocation5 + $0x40] sm:$0xff]
    %v88 = vld [vmem:[#allocation5 + $0x48] sm:$0xff]
    %v89 = vld [vmem:[#allocation5 + $0x50] sm:$0xff]
    %v90 = vld [vmem:[#allocation5 + $0x58] sm:$0xff]
    %v91 = vld [vmem:[#allocation5 + $0x60] sm:$0xff]
    %v92 = vld [vmem:[#allocation5 + $0x68] sm:$0xff]
    %v93 = vld [vmem:[#allocation5 + $0x70] sm:$0xff]
    %v94 = vld [vmem:[#allocation5 + $0x78] sm:$0xff]
    %v95 = vld [vmem:[#allocation5 + $0x80] sm:$0xff]
    %v96 = vld [vmem:[#allocation5 + $0x88] sm:$0xff]
    %v97 = vld [vmem:[#allocation5 + $0x90] sm:$0xff]
    %v98 = vld [vmem:[#allocation5 + $0x98] sm:$0xff]
    %v99 = vld [vmem:[#allocation5 + $0xa0] sm:$0xff]
    %v100 = vld [vmem:[#allocation5 + $0xa8] sm:$0xff]
    %v101 = vld [vmem:[#allocation5 + $0xb0] sm:$0xff]
    %v102 = vld [vmem:[#allocation5 + $0xb8] sm:$0xff]
    %v103 = vld [vmem:[#allocation5 + $0xc0] sm:$0xff]
    %v104 = vld [vmem:[#allocation5 + $0xc8] sm:$0xff]
    %v105 = vld [vmem:[#allocation5 + $0xd0] sm:$0xff]
    %v106 = vld [vmem:[#allocation5 + $0xd8] sm:$0xff]
    %v107 = vld [vmem:[#allocation5 + $0xe0] sm:$0xff]
    %v108 = vld [vmem:[#allocation5 + $0xe8] sm:$0xff]
    %v109 = vld [vmem:[#allocation5 + $0xf0] sm:$0xff]
    %v110 = vld [vmem:[#allocation5 + $0xf8] sm:$0xff]
    %v111 = vld [vmem:[#allocation7] sm:$0x3]
    %v113 = vperm.slane %v111, 0
    %v114 = vperm.slane %v111, 1
    %117 = vmatpush.msra.mxu0 %v109
    %118 = vmatpush.msra.mxu0 %v107
    %119 = vmatpush.msra.mxu0 %v105
    %120 = vmatpush.msra.mxu0 %v103
    %121 = vmatpush.msra.mxu0 %v101
    %122 = vmatpush.msra.mxu0 %v99
    %123 = vmatpush.msra.mxu0 %v97
    %124 = vmatpush.msra.mxu0 %v95
    %125 = vmatpush.msra.mxu0 %v93
    %126 = vmatpush.msra.mxu0 %v91
    %127 = vmatpush.msra.mxu0 %v89
    %128 = vmatpush.msra.mxu0 %v87
    %129 = vmatpush.msra.mxu0 %v85
    %130 = vmatpush.msra.mxu0 %v83
    %131 = vmatpush.msra.mxu0 %v81
    %132 = vmatpush.msra.mxu0 %v79
    %133 = vmatmul.f32.gmra.mxu0 %v77
    %v134 = vpop.f32.mrf.mxu0
    %v135 = vadd.f32 %v113, %v134
    %136 = vmatmul.f32.gmra.mxu0 %v78
    %v137 = vpop.f32.mrf.mxu0
    %v138 = vadd.f32 %v113, %v137
    %139 = vdwg.mxu0
    %140 = vmatpush.msra.mxu0 %v110
    %141 = vmatpush.msra.mxu0 %v108
    %142 = vmatpush.msra.mxu0 %v106
    %143 = vmatpush.msra.mxu0 %v104
    %144 = vmatpush.msra.mxu0 %v102
    %145 = vmatpush.msra.mxu0 %v100
    %146 = vmatpush.msra.mxu0 %v98
    %147 = vmatpush.msra.mxu0 %v96
    %148 = vmatpush.msra.mxu0 %v94
    %149 = vmatpush.msra.mxu0 %v92
    %150 = vmatpush.msra.mxu0 %v90
    %151 = vmatpush.msra.mxu0 %v88
    %152 = vmatpush.msra.mxu0 %v86
    %153 = vmatpush.msra.mxu0 %v84
    %154 = vmatpush.msra.mxu0 %v82
    %155 = vmatpush.msra.mxu0 %v80
    %156 = vmatmul.f32.gmra.mxu0 %v77
    %v157 = vpop.f32.mrf.mxu0
    %v158 = vadd.f32 %v114, %v157
    %159 = vmatmul.f32.gmra.mxu0 %v78
    %v160 = vpop.f32.mrf.mxu0
    %v161 = vadd.f32 %v114, %v160
    %162 = vdwg.mxu0
    %vm163 = vcmp.gt.f32.partialorder %v158, 0.0
    %vm164 = vcmp.gt.f32.partialorder %v161, 0.0
    %v165 = vld [vmem:[#allocation8] sm:$0xf]
    %v166 = vsel %vm163, 1, 0
    %v167 = vsel %vm164, 1, 0
    %168 = vset.pattern.permute.xlu0 2
    %169 = vperm.xlu0 %168, %v166
    %v170 = vpop.permute.xlu0 %169
    %171 = vset.pattern.permute.xlu0 2
    %172 = vperm.xlu0 %171, %v167
    %v173 = vpop.permute.xlu0 %172
    %vm174 = vcmp.eq.s32.totalorder %v170, 1
    %vm175 = vcmp.eq.s32.totalorder %v173, 1
    %v176 = vperm.slane %v165, 3
    %v177 = vperm.slane %v165, 2
    %v178 = vsel %vm174, %v176, %v177
    %v179 = vsel %vm175, %v176, %v177
    %180 = vset.pattern.permute.xlu0 1
    %181 = vperm.xlu0 %180, %v166
    %v182 = vpop.permute.xlu0 %181
    %183 = vset.pattern.permute.xlu0 1
    %184 = vperm.xlu0 %183, %v167
    %v185 = vpop.permute.xlu0 %184
    %vm186 = vcmp.eq.s32.totalorder %v182, 1
    %vm187 = vcmp.eq.s32.totalorder %v185, 1
    %v188 = vperm.slane %v165, 1
    %v189 = vperm.slane %v165, 0
    %v190 = vsel %vm186, %v188, %v189
    %v191 = vsel %vm187, %v188, %v189
    %192 = vset.pattern.permute.xlu0 0
    %193 = vperm.xlu0 %192, %v166
    %v194 = vpop.permute.xlu0 %193
    %195 = vset.pattern.permute.xlu0 0
    %196 = vperm.xlu0 %195, %v167
    %v197 = vpop.permute.xlu0 %196
    %vm198 = vcmp.eq.s32.totalorder %v194, 1
    %vm199 = vcmp.eq.s32.totalorder %v197, 1
    %v200 = vsel %vm198, %v178, %v190
    %v201 = vsel %vm199, %v179, %v191
    %v202 = vmul.f32 %v200, %v135
    %v203 = vmul.f32 %v201, %v138
    %204 = vst [vmem:[#allocation10] sm:$0xff] %v202
    %205 = vst [vmem:[#allocation10 + $0x8] sm:$0xff] %v203
    // Predicated region
    $region34: #{tpu_custom_call.1} parent=1 // pred_check
      _
    $region35: #{tpu_custom_call.1} parent=1 // pred_check_branch
      %207 = sbr.rel (0) target = $region37
    $region36: #{tpu_custom_call.1} parent=1 // pred_region
      %209 = vsyncadd [#allocation4], 0
      %s210 = sshll.u32 [#allocation10], 4
      %s211 = int_to_ptr.vmem [resolvable:$true] %s210
      %s212 = sshll.u32 %s4, 4
      %s213 = int_to_ptr.hbm [resolvable:$true] %s212
      %218 = dma.vmem_to_hbm [thread:$0]  %s211, 256, %s213, [#allocation4], 128, 128, 8
    $region37: #{tpu_custom_call.1} parent=1 // pred_fallthru
      _
    // Predicated region
    $region38: #{tpu_custom_call.1} parent=1 // pred_check
      _
    $region39: #{tpu_custom_call.1} parent=1 // pred_check_branch
      %220 = sbr.rel (0) target = $region41
    $region40: #{tpu_custom_call.1} parent=1 // pred_region
      %222 = dma.done [#allocation4], 256
    $region41: #{tpu_custom_call.1} parent=1 // pred_fallthru
      _
    %223 = vsyncpa [#allocation3], 1
    %224 = vsyncpa [#allocation6], 1
    %225 = vsyncpa [#allocation9], 1
    %226 = vsyncpa [#allocation4], 1

</llo_original>
